<compile_context>
chip_gen: v5e
topology: v5e:2x2
jax: 0.10.0
libtpu: 0.0.40
codegen_flags: <defaults>
</compile_context>

<pallas_src>
import numpy as np
import jax
import jax.numpy as jnp
from jax.experimental import pallas as pl
from jax.experimental.pallas import tpu as pltpu


# ----------------------------------------------------------------------------
# numerics helpers (kernel-safe: exp / log / max / abs / sqrt only)
# ----------------------------------------------------------------------------
def _softplus(x):
    return jnp.maximum(x, 0.0) + jnp.log(1.0 + jnp.exp(-jnp.abs(x)))


def _round_up(n, m):
    return ((n + m - 1) // m) * m


def _pad2(a, shape):
    return jnp.pad(a, [(0, s - d) for d, s in zip(a.shape, shape)])


# ----------------------------------------------------------------------------
# Pallas kernel (fully fused forward):
#   enc  = softplus(softplus(x W1 + b1) W2 + b2)
#   o    = enc [Wmu | Wvar] + [bmu | bvar]        (fused head, one MXU matmul)
#   mu   = o[lane 0],  var = exp(o[lane 1])
#   x    = softplus(mu + sqrt(var) * eps)
#   KL   = 0.5 * (log(pv/var) + (var + (mu - pm)^2)/pv - 1)
#   out  = lane-dense (1, 128) tile with [x, KL, mu, var] in lanes 0..3
# All operands are full-array VMEM blocks; scalars (eps, priors) live in SMEM.
# ----------------------------------------------------------------------------
def pv_kernel(scal_ref, x_ref, w1_ref, b1_ref, w2_ref, b2_ref, wh_ref, bh_ref,
              out_ref):
    # 2-layer softplus encoder; (1, Kp) lhs — Mosaic pads the sublanes for the MXU.
    h1 = _softplus(jnp.dot(x_ref[...], w1_ref[...],
                           preferred_element_type=jnp.float32) + b1_ref[...])
    h2 = _softplus(jnp.dot(h1, w2_ref[...],
                           preferred_element_type=jnp.float32) + b2_ref[...])
    # fused mu|var head: lane 0 = mu, lane 1 = pre-exp var, lanes 2.. = 0 by padding.
    o = jnp.dot(h2, wh_ref[...],
                preferred_element_type=jnp.float32) + bh_ref[...]          # (1, 128)

    lane = jax.lax.broadcasted_iota(jnp.int32, (1, 128), 1)
    mu = jnp.sum(jnp.where(lane == 0, o, 0.0), axis=1, keepdims=True)       # (1, 1)
    var = jnp.exp(jnp.sum(jnp.where(lane == 1, o, 0.0), axis=1, keepdims=True))

    # fused scalar tail: reparameterization + softplus + closed-form Gaussian KL.
    eps = scal_ref[0]
    p_mean = scal_ref[1]
    p_var = scal_ref[2]
    x = _softplus(mu + jnp.sqrt(var) * eps)
    kl = 0.5 * (jnp.log(p_var / var) + (var + (mu - p_mean) ** 2) / p_var - 1.0)

    # single lane-dense output tile: lanes [x, KL, mu, var, 0, ...]
    out_ref[...] = (jnp.where(lane == 0, x, 0.0)
                    + jnp.where(lane == 1, kl, 0.0)
                    + jnp.where(lane == 2, mu, 0.0)
                    + jnp.where(lane == 3, var, 0.0))


# ----------------------------------------------------------------------------
# one-time parameter preparation (hoisted out of the per-forward path)
# ----------------------------------------------------------------------------
def prepare_pv_params(W1, b1, W2, b2, Wmu, bmu, Wvar, bvar):
    """Pad / fuse the ProcessVariance MLP weights once.

    Weight layout is (in_features, out_features); mu and var heads are fused into
    one (H, 2) head so the kernel does a single head matmul.

    Correctness of padding depends on TWO things: (a) biases are zero-padded, and
    (b) W2 / Wh are zero-padded along the ROWS corresponding to padded hidden
    columns.  (The padded hidden activations are softplus(0) = ln 2, NOT zero;
    the zero rows of the next weight kill those contributions.)  Do not change
    this padding scheme without re-deriving correctness."""
    K, H = W1.shape
    Kp, Hp = _round_up(K, 128), _round_up(H, 128)
    Wh = jnp.concatenate([Wmu, Wvar], axis=1)        # (H, 2): col 0 = mu, col 1 = var
    bh = jnp.concatenate([bmu, bvar], axis=0)        # (2,)
    f32 = jnp.float32
    return {
        'w1': _pad2(W1.astype(f32), (Kp, Hp)),
        'b1': _pad2(b1.reshape(1, H).astype(f32), (1, Hp)),
        'w2': _pad2(W2.astype(f32), (Hp, Hp)),
        'b2': _pad2(b2.reshape(1, H).astype(f32), (1, Hp)),
        'wh': _pad2(Wh.astype(f32), (Hp, 128)),
        'bh': _pad2(bh.reshape(1, 2).astype(f32), (1, 128)),
    }


# ----------------------------------------------------------------------------
# KL divergence (reference only — the kernel computes the same closed form)
# TODO(synk): KL_gaussian is referenced but not defined in the provided source;
# the standard closed-form KL( N(mu,var) || N(prior_mean,prior_var) ), summed,
# is assumed.
# ----------------------------------------------------------------------------
def KL_gaussian(mu, var, prior_mean, prior_var):
    return 0.5 * jnp.sum(jnp.log(prior_var / var)
                         + (var + (mu - prior_mean) ** 2) / prior_var - 1.0)


# ----------------------------------------------------------------------------
# ProcessVariance.forward
# ----------------------------------------------------------------------------
def process_variance_forward(x_vec, prep, eps, prior_mean, prior_var):
    """Mirrors ProcessVariance.forward: returns (x, KL) plus (mu, var).

    `eps` plays the role of self.sample_eps() (a standard-normal scalar drawn
    outside the kernel).  prior_mean / prior_var are traced data, not statics."""
    Kp = prep['w1'].shape[0]
    K = x_vec.shape[0]
    xp = jnp.pad(x_vec.astype(jnp.float32).reshape(1, K), ((0, 0), (0, Kp - K)))
    scal = jnp.concatenate([
        jnp.ravel(jnp.asarray(eps, jnp.float32)),
        jnp.ravel(jnp.asarray(prior_mean, jnp.float32)),
        jnp.ravel(jnp.asarray(prior_var, jnp.float32)),
    ])                                                                    # (3,)

    out = pl.pallas_call(
        pv_kernel,
        out_shape=jax.ShapeDtypeStruct((1, 128), jnp.float32),
        in_specs=[pl.BlockSpec(memory_space=pltpu.MemorySpace.SMEM)]       # scalars
                 + [pl.BlockSpec(memory_space=pltpu.MemorySpace.VMEM)] * 7,
        out_specs=pl.BlockSpec(memory_space=pltpu.MemorySpace.VMEM),
    )(scal, xp, prep['w1'], prep['b1'], prep['w2'], prep['b2'],
      prep['wh'], prep['bh'])

    x = out[0, 0:1]       # (1,)
    KL = out[0, 1]        # scalar
    mu = out[0, 2:3]      # (1,)
    var = out[0, 3:4]     # (1,)
    return x, KL, mu, var


# ----------------------------------------------------------------------------
# driver
# ----------------------------------------------------------------------------
if __name__ == "__main__":
    # input_dim as in the parent model: (num_taxa*num_subj + 1) * num_time
    input_dim = 198
    hidden_dim = 50
    prior_mean = float(np.log(np.exp(0.2 ** 2) - 1.0))   # log(exp(0.04) - 1)
    prior_var = 10.0

    key = jax.random.PRNGKey(0)
    ks = jax.random.split(key, 8)

    def lin(k, i, o, scale=0.05):
        kw, kb = jax.random.split(k)
        return (scale * jax.random.normal(kw, (i, o), jnp.float32),
                scale * jax.random.normal(kb, (o,), jnp.float32))

    W1, b1 = lin(ks[0], input_dim, hidden_dim)
    W2, b2 = lin(ks[1], hidden_dim, hidden_dim)
    Wmu, bmu = lin(ks[2], hidden_dim, 1)
    Wvar, bvar = lin(ks[3], hidden_dim, 1)
    x_in = jax.random.normal(ks[4], (input_dim,), jnp.float32)
    eps = jax.random.normal(ks[5], (1,), jnp.float32)     # self.sample_eps()

    # one-time padding / head fusion (outside the hot path)
    prep = prepare_pv_params(W1, b1, W2, b2, Wmu, bmu, Wvar, bvar)

    fwd = jax.jit(process_variance_forward)
    x, KL, mu, var = fwd(x_in, prep, eps, prior_mean, prior_var)
    jax.block_until_ready((x, KL, mu, var))

    # pure-JAX reference (correctness gate before trusting the kernel)
    def ref():
        h1 = _softplus(x_in @ W1 + b1)
        h2 = _softplus(h1 @ W2 + b2)
        mu_r = h2 @ Wmu + bmu
        var_r = jnp.exp(h2 @ Wvar + bvar)
        x_r = _softplus(mu_r + jnp.sqrt(var_r) * eps)
        KL_r = KL_gaussian(mu_r, var_r, prior_mean, prior_var)
        return x_r, KL_r, mu_r, var_r

    x_r, KL_r, mu_r, var_r = ref()
    np.testing.assert_allclose(np.asarray(mu), np.asarray(mu_r),
                               rtol=1e-5, atol=1e-5)
    np.testing.assert_allclose(np.asarray(var), np.asarray(var_r),
                               rtol=1e-5, atol=1e-5)
    np.testing.assert_allclose(np.asarray(x), np.asarray(x_r),
                               rtol=1e-5, atol=1e-5)
    np.testing.assert_allclose(float(KL), float(KL_r), rtol=1e-5, atol=1e-5)
    assert x.shape == (1,) and mu.shape == (1,) and var.shape == (1,)
    assert np.isfinite(float(x[0])) and np.isfinite(float(KL))
    print("KERNEL_OK")
</pallas_src>

<mosaic_0001>
module attributes {stable_mosaic.version = 11 : i64} {
  func.func @pv_kernel(%arg0: memref<3xf32, #tpu.memory_space<smem>>, %arg1: memref<1x256xf32, #tpu.memory_space<vmem>>, %arg2: memref<256x128xf32, #tpu.memory_space<vmem>>, %arg3: memref<1x128xf32, #tpu.memory_space<vmem>>, %arg4: memref<128x128xf32, #tpu.memory_space<vmem>>, %arg5: memref<1x128xf32, #tpu.memory_space<vmem>>, %arg6: memref<128x128xf32, #tpu.memory_space<vmem>>, %arg7: memref<1x128xf32, #tpu.memory_space<vmem>>, %arg8: memref<1x128xf32, #tpu.memory_space<vmem>>) attributes {dimension_semantics = [], scalar_prefetch = 0 : i64, scratch_operands = 0 : i64, tpu.core_type = #tpu.core_type<tc>} {
    %c0 = arith.constant 0 : index
    %c0_0 = arith.constant 0 : index
    %0 = vector.load %arg1[%c0, %c0_0] : memref<1x256xf32, #tpu.memory_space<vmem>>, vector<1x256xf32>
    %c0_1 = arith.constant 0 : index
    %c0_2 = arith.constant 0 : index
    %1 = vector.load %arg2[%c0_1, %c0_2] : memref<256x128xf32, #tpu.memory_space<vmem>>, vector<256x128xf32>
    %cst = arith.constant dense<0.000000e+00> : vector<1x128xf32>
    %2 = tpu.matmul %0, %1, %cst {dimension_numbers = #tpu.dot_dimension_numbers<[1], [0], [0], [1], [0, 0, 1, 1], [], []>} : vector<1x256xf32>, vector<256x128xf32>, vector<1x128xf32> -> vector<1x128xf32>
    %c0_3 = arith.constant 0 : index
    %c0_4 = arith.constant 0 : index
    %3 = vector.load %arg3[%c0_3, %c0_4] : memref<1x128xf32, #tpu.memory_space<vmem>>, vector<1x128xf32>
    %4 = arith.addf %2, %3 : vector<1x128xf32>
    %cst_5 = arith.constant 0.000000e+00 : f32
    %5 = vector.broadcast %cst_5 : f32 to vector<1x128xf32>
    %6 = arith.maximumf %4, %5 : vector<1x128xf32>
    %7 = math.absf %4 : vector<1x128xf32>
    %cst_6 = arith.constant 0.000000e+00 : f32
    %8 = vector.broadcast %cst_6 : f32 to vector<1x128xf32>
    %9 = arith.subf %8, %7 : vector<1x128xf32>
    %10 = math.exp %9 : vector<1x128xf32>
    %cst_7 = arith.constant 1.000000e+00 : f32
    %11 = vector.broadcast %cst_7 : f32 to vector<1x128xf32>
    %12 = arith.addf %11, %10 : vector<1x128xf32>
    %13 = math.log %12 : vector<1x128xf32>
    %14 = arith.addf %6, %13 : vector<1x128xf32>
    %c0_8 = arith.constant 0 : index
    %c0_9 = arith.constant 0 : index
    %15 = vector.load %arg4[%c0_8, %c0_9] : memref<128x128xf32, #tpu.memory_space<vmem>>, vector<128x128xf32>
    %cst_10 = arith.constant dense<0.000000e+00> : vector<1x128xf32>
    %16 = tpu.matmul %14, %15, %cst_10 {dimension_numbers = #tpu.dot_dimension_numbers<[1], [0], [0], [1], [0, 0, 1, 1], [], []>} : vector<1x128xf32>, vector<128x128xf32>, vector<1x128xf32> -> vector<1x128xf32>
    %c0_11 = arith.constant 0 : index
    %c0_12 = arith.constant 0 : index
    %17 = vector.load %arg5[%c0_11, %c0_12] : memref<1x128xf32, #tpu.memory_space<vmem>>, vector<1x128xf32>
    %18 = arith.addf %16, %17 : vector<1x128xf32>
    %cst_13 = arith.constant 0.000000e+00 : f32
    %19 = vector.broadcast %cst_13 : f32 to vector<1x128xf32>
    %20 = arith.maximumf %18, %19 : vector<1x128xf32>
    %21 = math.absf %18 : vector<1x128xf32>
    %cst_14 = arith.constant 0.000000e+00 : f32
    %22 = vector.broadcast %cst_14 : f32 to vector<1x128xf32>
    %23 = arith.subf %22, %21 : vector<1x128xf32>
    %24 = math.exp %23 : vector<1x128xf32>
    %cst_15 = arith.constant 1.000000e+00 : f32
    %25 = vector.broadcast %cst_15 : f32 to vector<1x128xf32>
    %26 = arith.addf %25, %24 : vector<1x128xf32>
    %27 = math.log %26 : vector<1x128xf32>
    %28 = arith.addf %20, %27 : vector<1x128xf32>
    %c0_16 = arith.constant 0 : index
    %c0_17 = arith.constant 0 : index
    %29 = vector.load %arg6[%c0_16, %c0_17] : memref<128x128xf32, #tpu.memory_space<vmem>>, vector<128x128xf32>
    %cst_18 = arith.constant dense<0.000000e+00> : vector<1x128xf32>
    %30 = tpu.matmul %28, %29, %cst_18 {dimension_numbers = #tpu.dot_dimension_numbers<[1], [0], [0], [1], [0, 0, 1, 1], [], []>} : vector<1x128xf32>, vector<128x128xf32>, vector<1x128xf32> -> vector<1x128xf32>
    %c0_19 = arith.constant 0 : index
    %c0_20 = arith.constant 0 : index
    %31 = vector.load %arg7[%c0_19, %c0_20] : memref<1x128xf32, #tpu.memory_space<vmem>>, vector<1x128xf32>
    %32 = arith.addf %30, %31 : vector<1x128xf32>
    %33 = tpu.iota {dimensions = array<i32: 1>} : vector<1x128xi32>
    %c0_i32 = arith.constant 0 : i32
    %34 = vector.broadcast %c0_i32 : i32 to vector<1x128xi32>
    %35 = arith.cmpi eq, %33, %34 : vector<1x128xi32>
    %cst_21 = arith.constant 0.000000e+00 : f32
    %36 = vector.broadcast %cst_21 : f32 to vector<1x128xf32>
    %37 = arith.select %35, %32, %36 : vector<1x128xi1>, vector<1x128xf32>
    %cst_22 = arith.constant dense<0.000000e+00> : vector<1xf32>
    %38 = vector.multi_reduction <add>, %37, %cst_22 [1] : vector<1x128xf32> to vector<1xf32>
    %39 = vector.shape_cast %38 : vector<1xf32> to vector<1x1xf32>
    %c1_i32 = arith.constant 1 : i32
    %40 = vector.broadcast %c1_i32 : i32 to vector<1x128xi32>
    %41 = arith.cmpi eq, %33, %40 : vector<1x128xi32>
    %cst_23 = arith.constant 0.000000e+00 : f32
    %42 = vector.broadcast %cst_23 : f32 to vector<1x128xf32>
    %43 = arith.select %41, %32, %42 : vector<1x128xi1>, vector<1x128xf32>
    %cst_24 = arith.constant dense<0.000000e+00> : vector<1xf32>
    %44 = vector.multi_reduction <add>, %43, %cst_24 [1] : vector<1x128xf32> to vector<1xf32>
    %45 = vector.shape_cast %44 : vector<1xf32> to vector<1x1xf32>
    %46 = math.exp %45 : vector<1x1xf32>
    %c0_25 = arith.constant 0 : index
    %47 = memref.load %arg0[%c0_25] : memref<3xf32, #tpu.memory_space<smem>>
    %c1 = arith.constant 1 : index
    %48 = memref.load %arg0[%c1] : memref<3xf32, #tpu.memory_space<smem>>
    %c2 = arith.constant 2 : index
    %49 = memref.load %arg0[%c2] : memref<3xf32, #tpu.memory_space<smem>>
    %50 = math.sqrt %46 : vector<1x1xf32>
    %51 = vector.broadcast %47 : f32 to vector<1x1xf32>
    %52 = arith.mulf %50, %51 : vector<1x1xf32>
    %53 = arith.addf %39, %52 : vector<1x1xf32>
    %cst_26 = arith.constant 0.000000e+00 : f32
    %54 = vector.broadcast %cst_26 : f32 to vector<1x1xf32>
    %55 = arith.maximumf %53, %54 : vector<1x1xf32>
    %56 = math.absf %53 : vector<1x1xf32>
    %cst_27 = arith.constant 0.000000e+00 : f32
    %57 = vector.broadcast %cst_27 : f32 to vector<1x1xf32>
    %58 = arith.subf %57, %56 : vector<1x1xf32>
    %59 = math.exp %58 : vector<1x1xf32>
    %cst_28 = arith.constant 1.000000e+00 : f32
    %60 = vector.broadcast %cst_28 : f32 to vector<1x1xf32>
    %61 = arith.addf %60, %59 : vector<1x1xf32>
    %62 = math.log %61 : vector<1x1xf32>
    %63 = arith.addf %55, %62 : vector<1x1xf32>
    %64 = vector.broadcast %49 : f32 to vector<1x1xf32>
    %65 = arith.divf %64, %46 : vector<1x1xf32>
    %66 = math.log %65 : vector<1x1xf32>
    %67 = vector.broadcast %48 : f32 to vector<1x1xf32>
    %68 = arith.subf %39, %67 : vector<1x1xf32>
    %69 = arith.mulf %68, %68 : vector<1x1xf32>
    %70 = arith.addf %46, %69 : vector<1x1xf32>
    %71 = vector.broadcast %49 : f32 to vector<1x1xf32>
    %72 = arith.divf %70, %71 : vector<1x1xf32>
    %73 = arith.addf %66, %72 : vector<1x1xf32>
    %cst_29 = arith.constant 1.000000e+00 : f32
    %74 = vector.broadcast %cst_29 : f32 to vector<1x1xf32>
    %75 = arith.subf %73, %74 : vector<1x1xf32>
    %cst_30 = arith.constant 5.000000e-01 : f32
    %76 = vector.broadcast %cst_30 : f32 to vector<1x1xf32>
    %77 = arith.mulf %76, %75 : vector<1x1xf32>
    %c0_i32_31 = arith.constant 0 : i32
    %78 = vector.broadcast %c0_i32_31 : i32 to vector<1x128xi32>
    %79 = arith.cmpi eq, %33, %78 : vector<1x128xi32>
    %cst_32 = arith.constant 0.000000e+00 : f32
    %80 = vector.shape_cast %63 : vector<1x1xf32> to vector<1x1xf32>
    %81 = vector.broadcast %80 : vector<1x1xf32> to vector<1x128xf32>
    %82 = vector.broadcast %cst_32 : f32 to vector<1x128xf32>
    %83 = arith.select %79, %81, %82 : vector<1x128xi1>, vector<1x128xf32>
    %c1_i32_33 = arith.constant 1 : i32
    %84 = vector.broadcast %c1_i32_33 : i32 to vector<1x128xi32>
    %85 = arith.cmpi eq, %33, %84 : vector<1x128xi32>
    %cst_34 = arith.constant 0.000000e+00 : f32
    %86 = vector.shape_cast %77 : vector<1x1xf32> to vector<1x1xf32>
    %87 = vector.broadcast %86 : vector<1x1xf32> to vector<1x128xf32>
    %88 = vector.broadcast %cst_34 : f32 to vector<1x128xf32>
    %89 = arith.select %85, %87, %88 : vector<1x128xi1>, vector<1x128xf32>
    %90 = arith.addf %83, %89 : vector<1x128xf32>
    %c2_i32 = arith.constant 2 : i32
    %91 = vector.broadcast %c2_i32 : i32 to vector<1x128xi32>
    %92 = arith.cmpi eq, %33, %91 : vector<1x128xi32>
    %cst_35 = arith.constant 0.000000e+00 : f32
    %93 = vector.shape_cast %39 : vector<1x1xf32> to vector<1x1xf32>
    %94 = vector.broadcast %93 : vector<1x1xf32> to vector<1x128xf32>
    %95 = vector.broadcast %cst_35 : f32 to vector<1x128xf32>
    %96 = arith.select %92, %94, %95 : vector<1x128xi1>, vector<1x128xf32>
    %97 = arith.addf %90, %96 : vector<1x128xf32>
    %c3_i32 = arith.constant 3 : i32
    %98 = vector.broadcast %c3_i32 : i32 to vector<1x128xi32>
    %99 = arith.cmpi eq, %33, %98 : vector<1x128xi32>
    %cst_36 = arith.constant 0.000000e+00 : f32
    %100 = vector.shape_cast %46 : vector<1x1xf32> to vector<1x1xf32>
    %101 = vector.broadcast %100 : vector<1x1xf32> to vector<1x128xf32>
    %102 = vector.broadcast %cst_36 : f32 to vector<1x128xf32>
    %103 = arith.select %99, %101, %102 : vector<1x128xi1>, vector<1x128xf32>
    %104 = arith.addf %97, %103 : vector<1x128xf32>
    %c0_37 = arith.constant 0 : index
    %c0_38 = arith.constant 0 : index
    %105 = vector.load %arg8[%c0_37, %c0_38] : memref<1x128xf32, #tpu.memory_space<vmem>>, vector<1x128xf32>
    tpu.vector_store %arg8[%c0_37, %c0_38], %104 {strides = array<i32>} : memref<1x128xf32, #tpu.memory_space<vmem>>, vector<1x128xf32>,
    return
  }
}

</mosaic_0001>

<llo_original>
// kernel: process_variance_forward.1
$region0: #{process_variance_forward.1}
  #allocation0 [shape = 'u32[]', space=smem, size = 0x4, offset = 0x4, fixed_abs, tag = 'smem constant byte address 0x4 - core index']
  #allocation1 [shape = 'u32[72,128]{1,0:T(1,128)}', space=vmem, size = 0x9000, scoped, tag = 'internal scratch']
  %s0 = inlined_call_operand.vmem [shape: f32[3], index: 0, kind: input, shape index: {}]
  %s1 = inlined_call_operand.vmem [shape: f32[1,256], index: 1, kind: input, shape index: {}]
  %s2 = inlined_call_operand.hbm [shape: f32[256,128], index: 2, kind: input, shape index: {}]
  %s3 = inlined_call_operand.vmem [shape: f32[1,128], index: 3, kind: input, shape index: {}]
  %s4 = inlined_call_operand.hbm [shape: f32[128,128], index: 4, kind: input, shape index: {}]
  %s5 = inlined_call_operand.vmem [shape: f32[1,128], index: 5, kind: input, shape index: {}]
  %s6 = inlined_call_operand.hbm [shape: f32[128,128], index: 6, kind: input, shape index: {}]
  %s7 = inlined_call_operand.vmem [shape: f32[1,128], index: 7, kind: input, shape index: {}]
  %s8 = inlined_call_operand.vmem [shape: f32[1,128], index: 8, kind: output, shape index: {}]
  %s9 = sld [smem:[#allocation0]]
  $region58: #{process_variance_forward.1} parent=0
    _
  %s11 = ssub.s32 1, %s9
  %s12 = scalar_select 0, %s11, %s9
  $region1: #{process_variance_forward.1} parent=0
    #allocation2 [shape = 'u8[512]{0}', space=smem, size = 0x200, scoped, tag = 'input window, operand 0, single buffered']
    #allocation3 [shape = 's32[1]{0}', space=sflag, size = 0x4, scoped, tag = 'scoped memory for process_variance_forward.1']
    #allocation4 [shape = 's32[1]{0}', space=sflag, size = 0x4, scoped, tag = 'scoped memory for process_variance_forward.1']
    #allocation5 [shape = 'u8[131072]{0}', space=vmem, size = 0x20000, scoped, tag = 'input window, operand 2, single buffered']
    #allocation6 [shape = 'u8[65536]{0}', space=vmem, size = 0x10000, scoped, tag = 'input window, operand 4, single buffered']
    #allocation7 [shape = 's32[1]{0}', space=sflag, size = 0x4, scoped, tag = 'scoped memory for process_variance_forward.1']
    #allocation8 [shape = 'u8[65536]{0}', space=vmem, size = 0x10000, scoped, tag = 'input window, operand 6, single buffered']
    %13 = vsyncpa [#allocation4], 0
    %14 = vsyncpa [#allocation3], 0
    %15 = vsyncpa [#allocation7], 0
    // Predicated region
    $region2: #{process_variance_forward.1} parent=1 // pred_check
      _
    $region3: #{process_variance_forward.1} parent=1 // pred_check_branch
      %17 = sbr.rel (0) target = $region5
    $region4: #{process_variance_forward.1} parent=1 // pred_region
      %19 = vsyncadd [#allocation4], 0
      %s21 = sshll.u32 %s0, 4
      %s22 = int_to_ptr.vmem [resolvable:$true] %s21
      %24 = dma.vmem_to_smem %s22, 16, [#allocation2], [#allocation4]
    $region5: #{process_variance_forward.1} parent=1 // pred_fallthru
      _
    // Predicated region
    $region6: #{process_variance_forward.1} parent=1 // pred_check
      _
    $region7: #{process_variance_forward.1} parent=1 // pred_check_branch
      %26 = sbr.rel (0) target = $region9
    $region8: #{process_variance_forward.1} parent=1 // pred_region
      _
    $region9: #{process_variance_forward.1} parent=1 // pred_fallthru
      _
    // Predicated region
    $region10: #{process_variance_forward.1} parent=1 // pred_check
      _
    $region11: #{process_variance_forward.1} parent=1 // pred_check_branch
      %28 = sbr.rel (0) target = $region13
    $region12: #{process_variance_forward.1} parent=1 // pred_region
      %30 = vsyncadd [#allocation3], 0
      %s31 = sshll.u32 %s2, 4
      %s32 = int_to_ptr.hbm [resolvable:$true] %s31
      %s33 = sshll.u32 [#allocation5], 4
      %s34 = int_to_ptr.vmem [resolvable:$true] %s33
      %39 = dma.hbm_to_vmem [thread:$0]  %s32, 4096, %s34, [#allocation3], 128, 128, 8
    $region13: #{process_variance_forward.1} parent=1 // pred_fallthru
      _
    // Predicated region
    $region14: #{process_variance_forward.1} parent=1 // pred_check
      _
    $region15: #{process_variance_forward.1} parent=1 // pred_check_branch
      %41 = sbr.rel (0) target = $region17
    $region16: #{process_variance_forward.1} parent=1 // pred_region
      _
    $region17: #{process_variance_forward.1} parent=1 // pred_fallthru
      _
    // Predicated region
    $region18: #{process_variance_forward.1} parent=1 // pred_check
      _
    $region19: #{process_variance_forward.1} parent=1 // pred_check_branch
      %43 = sbr.rel (0) target = $region21
    $region20: #{process_variance_forward.1} parent=1 // pred_region
      %45 = vsyncadd [#allocation7], 0
      %s46 = sshll.u32 %s4, 4
      %s47 = int_to_ptr.hbm [resolvable:$true] %s46
      %s48 = sshll.u32 [#allocation6], 4
      %s49 = int_to_ptr.vmem [resolvable:$true] %s48
      %54 = dma.hbm_to_vmem [thread:$0]  %s47, 2048, %s49, [#allocation7], 128, 128, 8
    $region21: #{process_variance_forward.1} parent=1 // pred_fallthru
      _
    // Predicated region
    $region22: #{process_variance_forward.1} parent=1 // pred_check
      _
    $region23: #{process_variance_forward.1} parent=1 // pred_check_branch
      %56 = sbr.rel (0) target = $region25
    $region24: #{process_variance_forward.1} parent=1 // pred_region
      _
    $region25: #{process_variance_forward.1} parent=1 // pred_fallthru
      _
    // Predicated region
    $region26: #{process_variance_forward.1} parent=1 // pred_check
      _
    $region27: #{process_variance_forward.1} parent=1 // pred_check_branch
      %58 = sbr.rel (0) target = $region29
    $region28: #{process_variance_forward.1} parent=1 // pred_region
      %60 = vsyncadd [#allocation7], 0
      %s61 = sshll.u32 %s6, 4
      %s62 = int_to_ptr.hbm [resolvable:$true] %s61
      %s63 = sshll.u32 [#allocation8], 4
      %s64 = int_to_ptr.vmem [resolvable:$true] %s63
      %69 = dma.hbm_to_vmem [thread:$0]  %s62, 2048, %s64, [#allocation7], 128, 128, 8
    $region29: #{process_variance_forward.1} parent=1 // pred_fallthru
      _
    // Predicated region
    $region30: #{process_variance_forward.1} parent=1 // pred_check
      _
    $region31: #{process_variance_forward.1} parent=1 // pred_check_branch
      %71 = sbr.rel (0) target = $region33
    $region32: #{process_variance_forward.1} parent=1 // pred_region
      _
    $region33: #{process_variance_forward.1} parent=1 // pred_fallthru
      _
    // Predicated region
    $region34: #{process_variance_forward.1} parent=1 // pred_check
      _
    $region35: #{process_variance_forward.1} parent=1 // pred_check_branch
      %73 = sbr.rel (0) target = $region37
    $region36: #{process_variance_forward.1} parent=1 // pred_region
      %75 = dma.done [#allocation4], 16
    $region37: #{process_variance_forward.1} parent=1 // pred_fallthru
      _
    // Predicated region
    $region38: #{process_variance_forward.1} parent=1 // pred_check
      _
    $region39: #{process_variance_forward.1} parent=1 // pred_check_branch
      %77 = sbr.rel (0) target = $region41
    $region40: #{process_variance_forward.1} parent=1 // pred_region
      %79 = dma.done [#allocation3], 4096
    $region41: #{process_variance_forward.1} parent=1 // pred_fallthru
      _
    // Predicated region
    $region42: #{process_variance_forward.1} parent=1 // pred_check
      _
    $region43: #{process_variance_forward.1} parent=1 // pred_check_branch
      %81 = sbr.rel (0) target = $region45
    $region44: #{process_variance_forward.1} parent=1 // pred_region
      %83 = dma.done [#allocation7], 2048
    $region45: #{process_variance_forward.1} parent=1 // pred_fallthru
      _
    // Predicated region
    $region46: #{process_variance_forward.1} parent=1 // pred_check
      _
    $region47: #{process_variance_forward.1} parent=1 // pred_check_branch
      %85 = sbr.rel (0) target = $region49
    $region48: #{process_variance_forward.1} parent=1 // pred_region
      %87 = dma.done [#allocation7], 2048
    $region49: #{process_variance_forward.1} parent=1 // pred_fallthru
      _
    %88 = sfence
    %v89 = vld [vmem:[%s1] sm:$0x3]
    %v90 = vld [vmem:[#allocation5] sm:$0xff]
    %v91 = vld [vmem:[#allocation5 + $0x8] sm:$0xff]
    %v92 = vld [vmem:[#allocation5 + $0x10] sm:$0xff]
    %v93 = vld [vmem:[#allocation5 + $0x18] sm:$0xff]
    %v94 = vld [vmem:[#allocation5 + $0x20] sm:$0xff]
    %v95 = vld [vmem:[#allocation5 + $0x28] sm:$0xff]
    %v96 = vld [vmem:[#allocation5 + $0x30] sm:$0xff]
    %v97 = vld [vmem:[#allocation5 + $0x38] sm:$0xff]
    %v98 = vld [vmem:[#allocation5 + $0x40] sm:$0xff]
    %v99 = vld [vmem:[#allocation5 + $0x48] sm:$0xff]
    %v100 = vld [vmem:[#allocation5 + $0x50] sm:$0xff]
    %v101 = vld [vmem:[#allocation5 + $0x58] sm:$0xff]
    %v102 = vld [vmem:[#allocation5 + $0x60] sm:$0xff]
    %v103 = vld [vmem:[#allocation5 + $0x68] sm:$0xff]
    %v104 = vld [vmem:[#allocation5 + $0x70] sm:$0xff]
    %v105 = vld [vmem:[#allocation5 + $0x78] sm:$0xff]
    %v106 = vld [vmem:[#allocation5 + $0x80] sm:$0xff]
    %v107 = vld [vmem:[#allocation5 + $0x88] sm:$0xff]
    %v108 = vld [vmem:[#allocation5 + $0x90] sm:$0xff]
    %v109 = vld [vmem:[#allocation5 + $0x98] sm:$0xff]
    %v110 = vld [vmem:[#allocation5 + $0xa0] sm:$0xff]
    %v111 = vld [vmem:[#allocation5 + $0xa8] sm:$0xff]
    %v112 = vld [vmem:[#allocation5 + $0xb0] sm:$0xff]
    %v113 = vld [vmem:[#allocation5 + $0xb8] sm:$0xff]
    %v114 = vld [vmem:[#allocation5 + $0xc0] sm:$0xff]
    %v115 = vld [vmem:[#allocation5 + $0xc8] sm:$0xff]
    %v116 = vld [vmem:[#allocation5 + $0xd0] sm:$0xff]
    %v117 = vld [vmem:[#allocation5 + $0xd8] sm:$0xff]
    %v118 = vld [vmem:[#allocation5 + $0xe0] sm:$0xff]
    %v119 = vld [vmem:[#allocation5 + $0xe8] sm:$0xff]
    %v120 = vld [vmem:[#allocation5 + $0xf0] sm:$0xff]
    %v121 = vld [vmem:[#allocation5 + $0xf8] sm:$0xff]
    %v122 = vld [vmem:[%s3] sm:$0x1]
    %v124 = vperm.slane %v89, 0
    %v125 = vperm.slane %v89, 1
    %128 = vmatpush.msra.mxu0 %v105
    %129 = vmatpush.msra.mxu0 %v104
    %130 = vmatpush.msra.mxu0 %v103
    %131 = vmatpush.msra.mxu0 %v102
    %132 = vmatpush.msra.mxu0 %v101
    %133 = vmatpush.msra.mxu0 %v100
    %134 = vmatpush.msra.mxu0 %v99
    %135 = vmatpush.msra.mxu0 %v98
    %136 = vmatpush.msra.mxu0 %v97
    %137 = vmatpush.msra.mxu0 %v96
    %138 = vmatpush.msra.mxu0 %v95
    %139 = vmatpush.msra.mxu0 %v94
    %140 = vmatpush.msra.mxu0 %v93
    %141 = vmatpush.msra.mxu0 %v92
    %142 = vmatpush.msra.mxu0 %v91
    %143 = vmatpush.msra.mxu0 %v90
    %144 = vmatmul.f32.gmra.mxu0 %v124
    %v145 = vpop.f32.mrf.mxu0
    %v146 = vadd.f32 %v122, %v145
    %147 = vdwg.mxu0
    %148 = vmatpush.msra.mxu0 %v121
    %149 = vmatpush.msra.mxu0 %v120
    %150 = vmatpush.msra.mxu0 %v119
    %151 = vmatpush.msra.mxu0 %v118
    %152 = vmatpush.msra.mxu0 %v117
    %153 = vmatpush.msra.mxu0 %v116
    %154 = vmatpush.msra.mxu0 %v115
    %155 = vmatpush.msra.mxu0 %v114
    %156 = vmatpush.msra.mxu0 %v113
    %157 = vmatpush.msra.mxu0 %v112
    %158 = vmatpush.msra.mxu0 %v111
    %159 = vmatpush.msra.mxu0 %v110
    %160 = vmatpush.msra.mxu0 %v109
    %161 = vmatpush.msra.mxu0 %v108
    %162 = vmatpush.msra.mxu0 %v107
    %163 = vmatpush.msra.mxu0 %v106
    %164 = vmatmul.f32.gmra.mxu0 %v125
    %v165 = vpop.f32.mrf.mxu0
    %v166 = vadd.f32 %v146, %v165
    %167 = vdwg.mxu0
    %v168 = vmax.f32 %v166, 0.0
    %v169 = vand.u32 2147483647, %v166
    %v170 = vsub.f32 0.0, %v169
    %v171 = vmul.f32 %v170, 1.442695
    %v172 = vpow.pop %v171
    %v173 = vadd.f32 %v172, 1.0
    %v174 = vlog2.pop %v173
    %v175 = vmul.f32 %v174, 0.6931472
    %v176 = vadd.f32 %v168, %v175
    %v177 = vld [vmem:[#allocation6] sm:$0xff]
    %v178 = vld [vmem:[#allocation6 + $0x8] sm:$0xff]
    %v179 = vld [vmem:[#allocation6 + $0x10] sm:$0xff]
    %v180 = vld [vmem:[#allocation6 + $0x18] sm:$0xff]
    %v181 = vld [vmem:[#allocation6 + $0x20] sm:$0xff]
    %v182 = vld [vmem:[#allocation6 + $0x28] sm:$0xff]
    %v183 = vld [vmem:[#allocation6 + $0x30] sm:$0xff]
    %v184 = vld [vmem:[#allocation6 + $0x38] sm:$0xff]
    %v185 = vld [vmem:[#allocation6 + $0x40] sm:$0xff]
    %v186 = vld [vmem:[#allocation6 + $0x48] sm:$0xff]
    %v187 = vld [vmem:[#allocation6 + $0x50] sm:$0xff]
    %v188 = vld [vmem:[#allocation6 + $0x58] sm:$0xff]
    %v189 = vld [vmem:[#allocation6 + $0x60] sm:$0xff]
    %v190 = vld [vmem:[#allocation6 + $0x68] sm:$0xff]
    %v191 = vld [vmem:[#allocation6 + $0x70] sm:$0xff]
    %v192 = vld [vmem:[#allocation6 + $0x78] sm:$0xff]
    %v193 = vld [vmem:[%s5] sm:$0x1]
    %194 = vmatpush.msra.mxu0 %v192
    %195 = vmatpush.msra.mxu0 %v191
    %196 = vmatpush.msra.mxu0 %v190
    %197 = vmatpush.msra.mxu0 %v189
    %198 = vmatpush.msra.mxu0 %v188
    %199 = vmatpush.msra.mxu0 %v187
    %200 = vmatpush.msra.mxu0 %v186
    %201 = vmatpush.msra.mxu0 %v185
    %202 = vmatpush.msra.mxu0 %v184
    %203 = vmatpush.msra.mxu0 %v183
    %204 = vmatpush.msra.mxu0 %v182
    %205 = vmatpush.msra.mxu0 %v181
    %206 = vmatpush.msra.mxu0 %v180
    %207 = vmatpush.msra.mxu0 %v179
    %208 = vmatpush.msra.mxu0 %v178
    %209 = vmatpush.msra.mxu0 %v177
    %210 = vmatmul.f32.gmra.mxu0 %v176
    %v211 = vpop.f32.mrf.mxu0
    %v212 = vadd.f32 %v193, %v211
    %213 = vdwg.mxu0
    %v214 = vmax.f32 %v212, 0.0
    %v215 = vand.u32 2147483647, %v212
    %v216 = vsub.f32 0.0, %v215
    %v217 = vmul.f32 %v216, 1.442695
    %v218 = vpow.pop %v217
    %v219 = vadd.f32 %v218, 1.0
    %v220 = vlog2.pop %v219
    %v221 = vmul.f32 %v220, 0.6931472
    %v222 = vadd.f32 %v214, %v221
    %v223 = vld [vmem:[#allocation8] sm:$0xff]
    %v224 = vld [vmem:[#allocation8 + $0x8] sm:$0xff]
    %v225 = vld [vmem:[#allocation8 + $0x10] sm:$0xff]
    %v226 = vld [vmem:[#allocation8 + $0x18] sm:$0xff]
    %v227 = vld [vmem:[#allocation8 + $0x20] sm:$0xff]
    %v228 = vld [vmem:[#allocation8 + $0x28] sm:$0xff]
    %v229 = vld [vmem:[#allocation8 + $0x30] sm:$0xff]
    %v230 = vld [vmem:[#allocation8 + $0x38] sm:$0xff]
    %v231 = vld [vmem:[#allocation8 + $0x40] sm:$0xff]
    %v232 = vld [vmem:[#allocation8 + $0x48] sm:$0xff]
    %v233 = vld [vmem:[#allocation8 + $0x50] sm:$0xff]
    %v234 = vld [vmem:[#allocation8 + $0x58] sm:$0xff]
    %v235 = vld [vmem:[#allocation8 + $0x60] sm:$0xff]
    %v236 = vld [vmem:[#allocation8 + $0x68] sm:$0xff]
    %v237 = vld [vmem:[#allocation8 + $0x70] sm:$0xff]
    %v238 = vld [vmem:[#allocation8 + $0x78] sm:$0xff]
    %v239 = vld [vmem:[%s7] sm:$0x1]
    %240 = vmatpush.msra.mxu0 %v238
    %241 = vmatpush.msra.mxu0 %v237
    %242 = vmatpush.msra.mxu0 %v236
    %243 = vmatpush.msra.mxu0 %v235
    %244 = vmatpush.msra.mxu0 %v234
    %245 = vmatpush.msra.mxu0 %v233
    %246 = vmatpush.msra.mxu0 %v232
    %247 = vmatpush.msra.mxu0 %v231
    %248 = vmatpush.msra.mxu0 %v230
    %249 = vmatpush.msra.mxu0 %v229
    %250 = vmatpush.msra.mxu0 %v228
    %251 = vmatpush.msra.mxu0 %v227
    %252 = vmatpush.msra.mxu0 %v226
    %253 = vmatpush.msra.mxu0 %v225
    %254 = vmatpush.msra.mxu0 %v224
    %255 = vmatpush.msra.mxu0 %v223
    %256 = vmatmul.f32.gmra.mxu0 %v222
    %v257 = vpop.f32.mrf.mxu0
    %v258 = vadd.f32 %v239, %v257
    %259 = vdwg.mxu0
    %v260 = vlaneseq
    %v261 = vand.u32 %v260, 127
    %vm262 = vcmp.eq.s32.totalorder %v261, 0
    %v263 = vsel %vm262, %v258, 0.0
    %vm264 = vcmask 1040384
    %v265 = vsel %vm264, %v263, 0.0
    %266 = vadd.xlane.f32.xlu0 %v265
    %v267 = vpop.xlane.xlu0 %266
    %vm268 = vcmp.eq.s32.totalorder %v261, 1
    %v269 = vsel %vm268, %v258, 0.0
    %v270 = vsel %vm264, %v269, 0.0
    %271 = vadd.xlane.f32.xlu0 %v270
    %v272 = vpop.xlane.xlu0 %271
    %v273 = vmul.f32 %v272, 1.442695
    %v274 = vpow.pop %v273
    %s275 = sld [smem:[#allocation2]]
    %s276 = sld [smem:[#allocation2 + $0x1]]
    %s277 = sld [smem:[#allocation2 + $0x2]]
    %v278 = vrsqrt.pop %v274
    %v279 = vmul.f32 %v278, %v274
    %v280 = vmul.f32 %v279, %v278
    %v281 = vmul.f32 0.5, %v280
    %v282 = vsub.f32 1.5, %v281
    %v283 = vmul.f32 %v278, %v282
    %v284 = vmul.f32 %v274, %v283
    %vm285 = vcmp.eq.f32.partialorder %v274, inf
    %v286 = vsel %vm285, %v274, %v284
    %vm287 = vcmp.eq.f32.partialorder %v274, 0.0
    %v288 = vand.u32 %v274, 2147483648
    %v289 = vsel %vm287, %v288, %v286
    %v290 = vstv %s275
    %v291 = vmul.f32 %v289, %v290
    %v292 = vadd.f32 %v267, %v291
    %v293 = vmax.f32 %v292, 0.0
    %v294 = vand.u32 2147483647, %v292
    %v295 = vsub.f32 0.0, %v294
    %v296 = vmul.f32 %v295, 1.442695
    %v297 = vpow.pop %v296
    %v298 = vadd.f32 %v297, 1.0
    %v299 = vlog2.pop %v298
    %v300 = vmul.f32 %v299, 0.6931472
    %v301 = vadd.f32 %v293, %v300
    %v302 = vstv %s277
    %v303 = vrcp.pop %v274
    %v304 = vmul.f32 %v274, %v303
    %v305 = vsub.f32 1.0, %v304
    %v306 = vmul.f32 %v303, %v305
    %v307 = vadd.f32 %v303, %v306
    %vm308 = vweird.f32 %v274
    %vm309 = vweird.f32 %v303
    %vm310 = vmor %vm308, %vm309
    %v311 = vsel %vm310, %v303, %v307
    %v312 = vand.u32 2147483647, %v274
    %vm313 = vcmp.eq.f32.partialorder %v312, 8.507059e+37
    %v314 = vand.u32 %v274, 2147483648
    %v315 = vor.u32 1.1754944e-38, %v314
    %v316 = vsel %vm313, %v315, %v311
    %v317 = vmul.f32 %v302, %v316
    %v318 = vlog2.pop %v317
    %v319 = vmul.f32 %v318, 0.6931472
    %v320 = vstv %s276
    %v321 = vsub.f32 %v267, %v320
    %v322 = vmul.f32 %v321, %v321
    %v323 = vadd.f32 %v274, %v322
    %v324 = vrcp.pop %v302
    %v325 = vmul.f32 %v302, %v324
    %v326 = vsub.f32 1.0, %v325
    %v327 = vmul.f32 %v324, %v326
    %v328 = vadd.f32 %v324, %v327
    %vm329 = vweird.f32 %v302
    %vm330 = vweird.f32 %v324
    %vm331 = vmor %vm329, %vm330
    %v332 = vsel %vm331, %v324, %v328
    %v333 = vand.u32 2147483647, %v302
    %vm334 = vcmp.eq.f32.partialorder %v333, 8.507059e+37
    %v335 = vand.u32 %v302, 2147483648
    %v336 = vor.u32 1.1754944e-38, %v335
    %v337 = vsel %vm334, %v336, %v332
    %v338 = vmul.f32 %v323, %v337
    %v339 = vadd.f32 %v319, %v338
    %v340 = vsub.f32 %v339, 1.0
    %v341 = vmul.f32 %v340, 0.5
    %v342 = vsel %vm262, %v301, 0.0
    %v343 = vsel %vm268, %v341, 0.0
    %v344 = vadd.f32 %v342, %v343
    %vm345 = vcmp.eq.s32.totalorder %v261, 2
    %v346 = vsel %vm345, %v267, 0.0
    %v347 = vadd.f32 %v344, %v346
    %vm348 = vcmp.eq.s32.totalorder %v261, 3
    %v349 = vsel %vm348, %v274, 0.0
    %v350 = vadd.f32 %v347, %v349
    %351 = vst [vmem:[%s8] sm:$0x1] %v350
    // Predicated region
    $region50: #{process_variance_forward.1} parent=1 // pred_check
      _
    $region51: #{process_variance_forward.1} parent=1 // pred_check_branch
      %353 = sbr.rel (0) target = $region53
    $region52: #{process_variance_forward.1} parent=1 // pred_region
      _
    $region53: #{process_variance_forward.1} parent=1 // pred_fallthru
      _
    // Predicated region
    $region54: #{process_variance_forward.1} parent=1 // pred_check
      _
    $region55: #{process_variance_forward.1} parent=1 // pred_check_branch
      %355 = sbr.rel (0) target = $region57
    $region56: #{process_variance_forward.1} parent=1 // pred_region
      _
    $region57: #{process_variance_forward.1} parent=1 // pred_fallthru
      _
    %356 = vsyncpa [#allocation3], 1
    %357 = vsyncpa [#allocation7], 1
    %358 = vsyncpa [#allocation4], 1

</llo_original>
